<compile_context>
chip_gen: v5e
topology: v5e:2x2
jax: 0.10.0
libtpu: 0.0.40
codegen_flags: <defaults>
</compile_context>

<pallas_src>
import jax
import jax.numpy as jnp
from jax.experimental import pallas as pl
from jax.experimental.pallas import tpu as pltpu


def _make_posmlp_kernel(n_layers):
    """Kernel body for an MLP with `n_layers` PosLinear layers (transposed layout)."""

    def kernel(*refs):
        # refs = (xT_ref, w0, b0, w1, b1, ..., w_{L-1}, b_{L-1}, outT_ref)
        xT_ref = refs[0]
        out_ref = refs[-1]
        param_refs = refs[1:-1]

        h = xT_ref[...].astype(jnp.float32)                       # [in_dim, tb]
        for i in range(n_layers):
            # PosLinear weight transform: 2*relu(-W) + W == |W|
            w = jnp.abs(param_refs[2 * i][...].astype(jnp.float32))   # [out_i, in_i]
            b = param_refs[2 * i + 1][...].astype(jnp.float32)        # [out_i, 1]
            # Feature-major: |W| @ h^T  ->  [out_i, tb]; bias broadcasts over lanes.
            h = jnp.dot(w, h, preferred_element_type=jnp.float32) + b
            if i < n_layers - 1:
                # hidden-layer activation: ReLU (module default).  use_bn=False and
                # dropout_rate=0.0 (module defaults) are identities.
                h = jnp.maximum(h, 0.0)
        out_ref[...] = h.astype(out_ref.dtype)                    # [out_dim, tb]

    return kernel


def _pick_batch_tile(batch, batch_tile):
    """Pick a lane-friendly batch tile.

    - tile is a multiple of 128 whenever it is not the full (small) batch,
    - keeps >= 2 grid steps when the batch allows it (v7x has 2 TensorCores and
      the 'parallel' batch axis is what shards across them).
    """
    batch_tile = max(128, (batch_tile // 128) * 128)
    if batch < 256:
        return batch                       # single full-batch tile (full-dim block)
    if batch >= 2 * batch_tile:
        return batch_tile
    return max(128, ((batch // 2) // 128) * 128)


def pos_mlp_forward(x, weights, biases, *, batch_tile=512, out_dtype=None):
    """Fused PosMLP forward.

    x:       [B, input_dim]
    weights: list of [out_i, in_i] arrays
    biases:  list of [out_i] arrays
    returns: [B, output_dim]
    """
    assert len(weights) == len(biases)
    n_layers = len(weights)
    B, in_dim = x.shape
    out_dim = weights[-1].shape[0]
    out_dtype = out_dtype if out_dtype is not None else x.dtype

    # Biases as column vectors so they broadcast over the lane (batch) axis.
    biases_col = [b.reshape(-1, 1) for b in biases]

    # Feature-major layout: batch on the lane axis.
    xT = x.T                                               # [in_dim, B]

    tb = _pick_batch_tile(B, batch_tile)
    n_steps = pl.cdiv(B, tb)
    Bp = n_steps * tb
    if Bp != B:
        xT = jnp.pad(xT, ((0, 0), (0, Bp - B)))            # zero-pad ragged batch

    in_specs = [pl.BlockSpec((in_dim, tb), lambda i: (0, i))]
    for w, b in zip(weights, biases_col):
        # Full-array weight/bias blocks, grid-invariant index_map -> resident in VMEM.
        in_specs.append(pl.BlockSpec(w.shape, lambda i: (0, 0)))
        in_specs.append(pl.BlockSpec(b.shape, lambda i: (0, 0)))

    out_spec = pl.BlockSpec((out_dim, tb), lambda i: (0, i))

    call = pl.pallas_call(
        _make_posmlp_kernel(n_layers),
        out_shape=jax.ShapeDtypeStruct((out_dim, Bp), out_dtype),
        grid_spec=pltpu.PrefetchScalarGridSpec(
            num_scalar_prefetch=0,
            grid=(n_steps,),
            in_specs=in_specs,
            out_specs=out_spec,
        ),
        compiler_params=pltpu.CompilerParams(
            dimension_semantics=("parallel",),
            # Explicit cap: matches v6e/v7x default and raises v5e's 16 MiB default
            # so multi-thousand-row batch tiles still compile there.
            vmem_limit_bytes=32 * 1024 * 1024,
        ),
    )

    flat_params = []
    for w, b in zip(weights, biases_col):
        flat_params.extend([w, b])

    outT = call(xT, *flat_params)                          # [out_dim, Bp]
    return outT[:, :B].T                                   # [B, out_dim]


def pos_mlp_reference(x, weights, biases):
    """Pure-JAX reference matching the PyTorch module (defaults)."""
    h = x.astype(jnp.float32)
    n = len(weights)
    for i, (w, b) in enumerate(zip(weights, biases)):
        w_eff = 2.0 * jnp.maximum(-w, 0.0) + w             # == |W|
        h = h @ w_eff.T + b
        if i < n - 1:
            h = jnp.maximum(h, 0.0)
    return h.astype(x.dtype)


def init_posmlp_params(key, input_dim, output_dim, dnn_units):
    """Deterministic init mirroring nn.Linear default (uniform +-1/sqrt(fan_in))."""
    dims = [input_dim] + list(dnn_units) + [output_dim]
    weights, biases = [], []
    for i in range(len(dims) - 1):
        fan_in, fan_out = dims[i], dims[i + 1]
        key, kw, kb = jax.random.split(key, 3)
        bound = 1.0 / jnp.sqrt(fan_in)
        w = jax.random.uniform(kw, (fan_out, fan_in), jnp.float32, -bound, bound)
        b = jax.random.uniform(kb, (fan_out,), jnp.float32, -bound, bound)
        weights.append(w)
        biases.append(b)
    return weights, biases


if __name__ == "__main__":
    key = jax.random.PRNGKey(0)

    # PosMLP(input_dim=16, output_dim=8, dnn_units=[32, 32]).
    # batch=256 with a 128-row tile -> 2 grid steps (exercises tiling + both v7x TCs).
    batch = 256
    input_dim = 16
    output_dim = 8
    dnn_units = [32, 32]

    key, kx, kp = jax.random.split(key, 3)
    x = jax.random.normal(kx, (batch, input_dim), jnp.float32)
    weights, biases = init_posmlp_params(kp, input_dim, output_dim, dnn_units)

    out = pos_mlp_forward(x, weights, biases, batch_tile=128)
    out = jax.block_until_ready(out)

    ref = pos_mlp_reference(x, weights, biases)
    assert out.shape == (batch, output_dim)
    assert jnp.allclose(out, ref, atol=1e-4, rtol=1e-4), "mismatch vs reference"

    # Also check a small ragged batch (padding path) and a single-tile batch.
    x_small = jax.random.normal(key, (7, input_dim), jnp.float32)
    out_small = jax.block_until_ready(pos_mlp_forward(x_small, weights, biases))
    ref_small = pos_mlp_reference(x_small, weights, biases)
    assert out_small.shape == (7, output_dim)
    assert jnp.allclose(out_small, ref_small, atol=1e-4, rtol=1e-4), "ragged mismatch"

    print("KERNEL_OK")
</pallas_src>

<mosaic_0001>
module attributes {stable_mosaic.version = 11 : i64} {
  func.func @kernel(%arg0: i32, %arg1: memref<16x128xf32, #tpu.memory_space<vmem>>, %arg2: memref<32x16xf32, #tpu.memory_space<vmem>>, %arg3: memref<32x1xf32, #tpu.memory_space<vmem>>, %arg4: memref<32x32xf32, #tpu.memory_space<vmem>>, %arg5: memref<32x1xf32, #tpu.memory_space<vmem>>, %arg6: memref<8x32xf32, #tpu.memory_space<vmem>>, %arg7: memref<8x1xf32, #tpu.memory_space<vmem>>, %arg8: memref<8x128xf32, #tpu.memory_space<vmem>>) attributes {dimension_semantics = [#tpu.dimension_semantics<parallel>], iteration_bounds = array<i64: 2>, scalar_prefetch = 0 : i64, scratch_operands = 0 : i64, tpu.core_type = #tpu.core_type<tc>, window_params = [{transform_indices = @transform_0, window_bounds = array<i64: 16, 128>}, {pipeline_mode = #tpu.pipeline_mode<synchronous>, transform_indices = @transform_1, window_bounds = array<i64: 32, 16>}, {pipeline_mode = #tpu.pipeline_mode<synchronous>, transform_indices = @transform_2, window_bounds = array<i64: 32, 1>}, {pipeline_mode = #tpu.pipeline_mode<synchronous>, transform_indices = @transform_3, window_bounds = array<i64: 32, 32>}, {pipeline_mode = #tpu.pipeline_mode<synchronous>, transform_indices = @transform_4, window_bounds = array<i64: 32, 1>}, {pipeline_mode = #tpu.pipeline_mode<synchronous>, transform_indices = @transform_5, window_bounds = array<i64: 8, 32>}, {pipeline_mode = #tpu.pipeline_mode<synchronous>, transform_indices = @transform_6, window_bounds = array<i64: 8, 1>}, {transform_indices = @transform_7, window_bounds = array<i64: 8, 128>}]} {
    %c0 = arith.constant 0 : index
    %c0_0 = arith.constant 0 : index
    %0 = vector.load %arg1[%c0, %c0_0] : memref<16x128xf32, #tpu.memory_space<vmem>>, vector<16x128xf32>
    %c0_1 = arith.constant 0 : index
    %c0_2 = arith.constant 0 : index
    %1 = vector.load %arg2[%c0_1, %c0_2] : memref<32x16xf32, #tpu.memory_space<vmem>>, vector<32x16xf32>
    %2 = math.absf %1 : vector<32x16xf32>
    %c0_3 = arith.constant 0 : index
    %c0_4 = arith.constant 0 : index
    %3 = vector.load %arg3[%c0_3, %c0_4] : memref<32x1xf32, #tpu.memory_space<vmem>>, vector<32x1xf32>
    %cst = arith.constant dense<0.000000e+00> : vector<32x128xf32>
    %4 = tpu.matmul %2, %0, %cst {dimension_numbers = #tpu.dot_dimension_numbers<[1], [0], [0], [1], [0, 0, 1, 1], [], []>} : vector<32x16xf32>, vector<16x128xf32>, vector<32x128xf32> -> vector<32x128xf32>
    %5 = vector.broadcast %3 : vector<32x1xf32> to vector<32x128xf32>
    %6 = arith.addf %4, %5 : vector<32x128xf32>
    %cst_5 = arith.constant 0.000000e+00 : f32
    %7 = vector.broadcast %cst_5 : f32 to vector<32x128xf32>
    %8 = arith.maximumf %6, %7 : vector<32x128xf32>
    %c0_6 = arith.constant 0 : index
    %c0_7 = arith.constant 0 : index
    %9 = vector.load %arg4[%c0_6, %c0_7] : memref<32x32xf32, #tpu.memory_space<vmem>>, vector<32x32xf32>
    %10 = math.absf %9 : vector<32x32xf32>
    %c0_8 = arith.constant 0 : index
    %c0_9 = arith.constant 0 : index
    %11 = vector.load %arg5[%c0_8, %c0_9] : memref<32x1xf32, #tpu.memory_space<vmem>>, vector<32x1xf32>
    %cst_10 = arith.constant dense<0.000000e+00> : vector<32x128xf32>
    %12 = tpu.matmul %10, %8, %cst_10 {dimension_numbers = #tpu.dot_dimension_numbers<[1], [0], [0], [1], [0, 0, 1, 1], [], []>} : vector<32x32xf32>, vector<32x128xf32>, vector<32x128xf32> -> vector<32x128xf32>
    %13 = vector.broadcast %11 : vector<32x1xf32> to vector<32x128xf32>
    %14 = arith.addf %12, %13 : vector<32x128xf32>
    %cst_11 = arith.constant 0.000000e+00 : f32
    %15 = vector.broadcast %cst_11 : f32 to vector<32x128xf32>
    %16 = arith.maximumf %14, %15 : vector<32x128xf32>
    %c0_12 = arith.constant 0 : index
    %c0_13 = arith.constant 0 : index
    %17 = vector.load %arg6[%c0_12, %c0_13] : memref<8x32xf32, #tpu.memory_space<vmem>>, vector<8x32xf32>
    %18 = math.absf %17 : vector<8x32xf32>
    %c0_14 = arith.constant 0 : index
    %c0_15 = arith.constant 0 : index
    %19 = vector.load %arg7[%c0_14, %c0_15] : memref<8x1xf32, #tpu.memory_space<vmem>>, vector<8x1xf32>
    %cst_16 = arith.constant dense<0.000000e+00> : vector<8x128xf32>
    %20 = tpu.matmul %18, %16, %cst_16 {dimension_numbers = #tpu.dot_dimension_numbers<[1], [0], [0], [1], [0, 0, 1, 1], [], []>} : vector<8x32xf32>, vector<32x128xf32>, vector<8x128xf32> -> vector<8x128xf32>
    %21 = vector.broadcast %19 : vector<8x1xf32> to vector<8x128xf32>
    %22 = arith.addf %20, %21 : vector<8x128xf32>
    %c0_17 = arith.constant 0 : index
    %c0_18 = arith.constant 0 : index
    %23 = vector.load %arg8[%c0_17, %c0_18] : memref<8x128xf32, #tpu.memory_space<vmem>>, vector<8x128xf32>
    tpu.vector_store %arg8[%c0_17, %c0_18], %22 {strides = array<i32>} : memref<8x128xf32, #tpu.memory_space<vmem>>, vector<8x128xf32>,
    return
  }
  func.func @transform_0(%arg0: i32) -> (i32, i32) {
    %c0_i32 = arith.constant 0 : i32
    %c0_i32_0 = arith.constant 0 : i32
    return %c0_i32, %arg0 : i32, i32
  }
  func.func @transform_1(%arg0: i32) -> (i32, i32) {
    %c0_i32 = arith.constant 0 : i32
    %c0_i32_0 = arith.constant 0 : i32
    %c0_i32_1 = arith.constant 0 : i32
    return %c0_i32, %c0_i32_0 : i32, i32
  }
  func.func @transform_2(%arg0: i32) -> (i32, i32) {
    %c0_i32 = arith.constant 0 : i32
    %c0_i32_0 = arith.constant 0 : i32
    %c0_i32_1 = arith.constant 0 : i32
    return %c0_i32, %c0_i32_0 : i32, i32
  }
  func.func @transform_3(%arg0: i32) -> (i32, i32) {
    %c0_i32 = arith.constant 0 : i32
    %c0_i32_0 = arith.constant 0 : i32
    %c0_i32_1 = arith.constant 0 : i32
    return %c0_i32, %c0_i32_0 : i32, i32
  }
  func.func @transform_4(%arg0: i32) -> (i32, i32) {
    %c0_i32 = arith.constant 0 : i32
    %c0_i32_0 = arith.constant 0 : i32
    %c0_i32_1 = arith.constant 0 : i32
    return %c0_i32, %c0_i32_0 : i32, i32
  }
  func.func @transform_5(%arg0: i32) -> (i32, i32) {
    %c0_i32 = arith.constant 0 : i32
    %c0_i32_0 = arith.constant 0 : i32
    %c0_i32_1 = arith.constant 0 : i32
    return %c0_i32, %c0_i32_0 : i32, i32
  }
  func.func @transform_6(%arg0: i32) -> (i32, i32) {
    %c0_i32 = arith.constant 0 : i32
    %c0_i32_0 = arith.constant 0 : i32
    %c0_i32_1 = arith.constant 0 : i32
    return %c0_i32, %c0_i32_0 : i32, i32
  }
  func.func @transform_7(%arg0: i32) -> (i32, i32) {
    %c0_i32 = arith.constant 0 : i32
    %c0_i32_0 = arith.constant 0 : i32
    return %c0_i32, %arg0 : i32, i32
  }
}

</mosaic_0001>

<llo_original>
// kernel: tpu_custom_call.1
$region0: #{tpu_custom_call.1}
  #allocation0 [shape = 'u32[]', space=smem, size = 0x4, offset = 0x4, fixed_abs, tag = 'smem constant byte address 0x4 - core index']
  #allocation1 [shape = 'u32[72,128]{1,0:T(1,128)}', space=vmem, size = 0x9000, scoped, tag = 'internal scratch']
  %s0 = inlined_call_operand.vmem [shape: f32[16,256], index: 0, kind: input, shape index: {}]
  %s1 = inlined_call_operand.vmem [shape: f32[32,16], index: 1, kind: input, shape index: {}]
  %s2 = inlined_call_operand.vmem [shape: f32[32,1], index: 2, kind: input, shape index: {}]
  %s3 = inlined_call_operand.vmem [shape: f32[32,32], index: 3, kind: input, shape index: {}]
  %s4 = inlined_call_operand.vmem [shape: f32[32,1], index: 4, kind: input, shape index: {}]
  %s5 = inlined_call_operand.vmem [shape: f32[8,32], index: 5, kind: input, shape index: {}]
  %s6 = inlined_call_operand.vmem [shape: f32[8,1], index: 6, kind: input, shape index: {}]
  %s7 = inlined_call_operand.hbm [shape: f32[8,256], index: 7, kind: output, shape index: {}]
  %s8 = sld [smem:[#allocation0]]
  $region99: #{tpu_custom_call.1} parent=0
    _
  %s10 = ssub.s32 1, %s8
  %s11 = scalar_select 0, %s10, %s8
  $region1: #{tpu_custom_call.1} parent=0
    #allocation2 [shape = 'u8[16384]{0}', space=vmem, size = 0x4000, scoped, tag = 'input window, operand 0']
    #allocation3 [shape = 'u8[8192]{0}', space=vmem, size = 0x2000, scoped, tag = 'output window, operand 0']
    #allocation4 [shape = 's32[2]{0}', space=sflag, size = 0x8, scoped, tag = 'scoped memory for tpu_custom_call.1']
    %12 = vsyncpa [#allocation4], 0
    %s13 = scalar_lea.sflag [#allocation4], 1
    %14 = vsyncpa %s13, 0
    loop: start=0, step=1, limit=4
    $region2: #{tpu_custom_call.1} parent=1 // loop_pre_header
      _
    $region3: #{tpu_custom_call.1} parent=1 // loop_header
      %s16 = sphi 0, %s20
      %p17 = scmp.ge.s32.totalorder %s16, 4
      %s26 = sphi 0, %s28
      %s29 = sphi 0, %s26
      %s30 = sphi 0, %s29
      %s46 = sphi 0, %s30
      %s50 = sphi 0, %s50
      %s52 = sphi 0, %s50
      %s53 = sphi 0, %s52
      %s67 = sphi 0, %s53
      %s71 = sphi 0, %s71
      %s73 = sphi 0, %s71
      %s74 = sphi 0, %s73
      %s88 = sphi 0, %s74
      %s92 = sphi 0, %s92
      %s94 = sphi 0, %s92
      %s95 = sphi 0, %s94
      %s109 = sphi 0, %s95
      %s113 = sphi 0, %s113
      %s115 = sphi 0, %s113
      %s116 = sphi 0, %s115
      %s130 = sphi 0, %s116
      %s134 = sphi 0, %s134
      %s136 = sphi 0, %s134
      %s137 = sphi 0, %s136
      %s151 = sphi 0, %s137
      %s155 = sphi 0, %s155
      %s157 = sphi 0, %s155
      %s158 = sphi 0, %s157
      %s172 = sphi 0, %s158
      %s178 = sphi 0, %s180
      %s181 = sphi 0, %s178
      %s182 = sphi 0, %s181
      %s198 = sphi 0, %s182
    $region4: #{tpu_custom_call.1} parent=1 // loop_header_branch
      %19 = sbr.rel (%p17) target = $region8
    $region5: #{tpu_custom_call.1} parent=1 // loop_body
      %s21 = ssub.s32 %s16, 1
      %s22 = ssub.s32 %s16, 2
      %s23 = sadd.s32 %s16, 1
      %s24 = ssub.s32 %s16, %s23
      %p25 = scmp.eq.s32.totalorder %s24, 0
      %s27 = sadd.s32 %s26, 1
      %s28 = scalar_select %p25, %s26, %s27
      %p31 = pneg %p25
      %p32 = scmp.eq.s32.totalorder %s16, 1
      %p33 = por %p31, %p32
      %p34 = scmp.ne.s32.totalorder %s26, %s29
      %p35 = scmp.eq.s32.totalorder %s16, 0
      %p36 = por %p34, %p35
      %p37 = scmp.ne.s32.totalorder %s26, %s29
      %p38 = scmp.eq.s32.totalorder %s21, 1
      %p39 = por %p37, %p38
      %p40 = scmp.ne.s32.totalorder %s29, %s30
      %p41 = scmp.eq.s32.totalorder %s21, 0
      %p42 = por %p40, %p41
      %p43 = scmp.ne.s32.totalorder %s29, %s30
      %p44 = scmp.eq.s32.totalorder %s22, 1
      %p45 = por %p43, %p44
      %p47 = scmp.ne.s32.totalorder %s30, %s46
      %p48 = scmp.eq.s32.totalorder %s22, 0
      %p49 = por %p47, %p48
      %s51 = sadd.s32 %s50, 1
      %p54 = scmp.eq.s32.totalorder %s16, 1
      %p55 = scmp.ne.s32.totalorder %s50, %s52
      %p56 = scmp.eq.s32.totalorder %s16, 0
      %p57 = por %p55, %p56
      %p58 = scmp.ne.s32.totalorder %s50, %s52
      %p59 = scmp.eq.s32.totalorder %s21, 1
      %p60 = por %p58, %p59
      %p61 = scmp.ne.s32.totalorder %s52, %s53
      %p62 = scmp.eq.s32.totalorder %s21, 0
      %p63 = por %p61, %p62
      %p64 = scmp.ne.s32.totalorder %s52, %s53
      %p65 = scmp.eq.s32.totalorder %s22, 1
      %p66 = por %p64, %p65
      %p68 = scmp.ne.s32.totalorder %s53, %s67
      %p69 = scmp.eq.s32.totalorder %s22, 0
      %p70 = por %p68, %p69
      %s72 = sadd.s32 %s71, 1
      %p75 = scmp.eq.s32.totalorder %s16, 1
      %p76 = scmp.ne.s32.totalorder %s71, %s73
      %p77 = scmp.eq.s32.totalorder %s16, 0
      %p78 = por %p76, %p77
      %p79 = scmp.ne.s32.totalorder %s71, %s73
      %p80 = scmp.eq.s32.totalorder %s21, 1
      %p81 = por %p79, %p80
      %p82 = scmp.ne.s32.totalorder %s73, %s74
      %p83 = scmp.eq.s32.totalorder %s21, 0
      %p84 = por %p82, %p83
      %p85 = scmp.ne.s32.totalorder %s73, %s74
      %p86 = scmp.eq.s32.totalorder %s22, 1
      %p87 = por %p85, %p86
      %p89 = scmp.ne.s32.totalorder %s74, %s88
      %p90 = scmp.eq.s32.totalorder %s22, 0
      %p91 = por %p89, %p90
      %s93 = sadd.s32 %s92, 1
      %p96 = scmp.eq.s32.totalorder %s16, 1
      %p97 = scmp.ne.s32.totalorder %s92, %s94
      %p98 = scmp.eq.s32.totalorder %s16, 0
      %p99 = por %p97, %p98
      %p100 = scmp.ne.s32.totalorder %s92, %s94
      %p101 = scmp.eq.s32.totalorder %s21, 1
      %p102 = por %p100, %p101
      %p103 = scmp.ne.s32.totalorder %s94, %s95
      %p104 = scmp.eq.s32.totalorder %s21, 0
      %p105 = por %p103, %p104
      %p106 = scmp.ne.s32.totalorder %s94, %s95
      %p107 = scmp.eq.s32.totalorder %s22, 1
      %p108 = por %p106, %p107
      %p110 = scmp.ne.s32.totalorder %s95, %s109
      %p111 = scmp.eq.s32.totalorder %s22, 0
      %p112 = por %p110, %p111
      %s114 = sadd.s32 %s113, 1
      %p117 = scmp.eq.s32.totalorder %s16, 1
      %p118 = scmp.ne.s32.totalorder %s113, %s115
      %p119 = scmp.eq.s32.totalorder %s16, 0
      %p120 = por %p118, %p119
      %p121 = scmp.ne.s32.totalorder %s113, %s115
      %p122 = scmp.eq.s32.totalorder %s21, 1
      %p123 = por %p121, %p122
      %p124 = scmp.ne.s32.totalorder %s115, %s116
      %p125 = scmp.eq.s32.totalorder %s21, 0
      %p126 = por %p124, %p125
      %p127 = scmp.ne.s32.totalorder %s115, %s116
      %p128 = scmp.eq.s32.totalorder %s22, 1
      %p129 = por %p127, %p128
      %p131 = scmp.ne.s32.totalorder %s116, %s130
      %p132 = scmp.eq.s32.totalorder %s22, 0
      %p133 = por %p131, %p132
      %s135 = sadd.s32 %s134, 1
      %p138 = scmp.eq.s32.totalorder %s16, 1
      %p139 = scmp.ne.s32.totalorder %s134, %s136
      %p140 = scmp.eq.s32.totalorder %s16, 0
      %p141 = por %p139, %p140
      %p142 = scmp.ne.s32.totalorder %s134, %s136
      %p143 = scmp.eq.s32.totalorder %s21, 1
      %p144 = por %p142, %p143
      %p145 = scmp.ne.s32.totalorder %s136, %s137
      %p146 = scmp.eq.s32.totalorder %s21, 0
      %p147 = por %p145, %p146
      %p148 = scmp.ne.s32.totalorder %s136, %s137
      %p149 = scmp.eq.s32.totalorder %s22, 1
      %p150 = por %p148, %p149
      %p152 = scmp.ne.s32.totalorder %s137, %s151
      %p153 = scmp.eq.s32.totalorder %s22, 0
      %p154 = por %p152, %p153
      %s156 = sadd.s32 %s155, 1
      %p159 = scmp.eq.s32.totalorder %s16, 1
      %p160 = scmp.ne.s32.totalorder %s155, %s157
      %p161 = scmp.eq.s32.totalorder %s16, 0
      %p162 = por %p160, %p161
      %p163 = scmp.ne.s32.totalorder %s155, %s157
      %p164 = scmp.eq.s32.totalorder %s21, 1
      %p165 = por %p163, %p164
      %p166 = scmp.ne.s32.totalorder %s157, %s158
      %p167 = scmp.eq.s32.totalorder %s21, 0
      %p168 = por %p166, %p167
      %p169 = scmp.ne.s32.totalorder %s157, %s158
      %p170 = scmp.eq.s32.totalorder %s22, 1
      %p171 = por %p169, %p170
      %p173 = scmp.ne.s32.totalorder %s158, %s172
      %p174 = scmp.eq.s32.totalorder %s22, 0
      %p175 = por %p173, %p174
      %s176 = ssub.s32 %s16, %s23
      %p177 = scmp.eq.s32.totalorder %s176, 0
      %s179 = sadd.s32 %s178, 1
      %s180 = scalar_select %p177, %s178, %s179
      %p183 = pneg %p177
      %p184 = scmp.eq.s32.totalorder %s16, 1
      %p185 = por %p183, %p184
      %p186 = scmp.ne.s32.totalorder %s178, %s181
      %p187 = scmp.eq.s32.totalorder %s16, 0
      %p188 = por %p186, %p187
      %p189 = scmp.ne.s32.totalorder %s178, %s181
      %p190 = scmp.eq.s32.totalorder %s21, 1
      %p191 = por %p189, %p190
      %p192 = scmp.ne.s32.totalorder %s181, %s182
      %p193 = scmp.eq.s32.totalorder %s21, 0
      %p194 = por %p192, %p193
      %p195 = scmp.ne.s32.totalorder %s181, %s182
      %p196 = scmp.eq.s32.totalorder %s22, 1
      %p197 = por %p195, %p196
      %p199 = scmp.ne.s32.totalorder %s182, %s198
      %p200 = scmp.eq.s32.totalorder %s22, 0
      %p201 = por %p199, %p200
      %p202 = scmp.le.s32.totalorder 1, %s16
      %p203 = scmp.lt.s32.totalorder %s16, 3
      %p204 = pnand %p202, %p203
      %p205 = pneg %p204
      // Predicated region
      $region9: #{tpu_custom_call.1} parent=5 // pred_check
        _
      $region10: #{tpu_custom_call.1} parent=5 // pred_check_branch
        %207 = sbr.rel (%p204) target = $region12
      $region11: #{tpu_custom_call.1} parent=5 // pred_region
        %s208 = ssub.s32 %s16, 1
        // Predicated region
        $region13: #{tpu_custom_call.1} parent=11 // pred_check
          %p209 = pneg %p63
        $region14: #{tpu_custom_call.1} parent=11 // pred_check_branch
          %211 = sbr.rel (%p209) target = $region16
        $region15: #{tpu_custom_call.1} parent=11 // pred_region
          _
        $region16: #{tpu_custom_call.1} parent=11 // pred_fallthru
          _
        // Predicated region
        $region17: #{tpu_custom_call.1} parent=11 // pred_check
          %p212 = pneg %p84
        $region18: #{tpu_custom_call.1} parent=11 // pred_check_branch
          %214 = sbr.rel (%p212) target = $region20
        $region19: #{tpu_custom_call.1} parent=11 // pred_region
          _
        $region20: #{tpu_custom_call.1} parent=11 // pred_fallthru
          _
        // Predicated region
        $region21: #{tpu_custom_call.1} parent=11 // pred_check
          %p215 = pneg %p105
        $region22: #{tpu_custom_call.1} parent=11 // pred_check_branch
          %217 = sbr.rel (%p215) target = $region24
        $region23: #{tpu_custom_call.1} parent=11 // pred_region
          _
        $region24: #{tpu_custom_call.1} parent=11 // pred_fallthru
          _
        // Predicated region
        $region25: #{tpu_custom_call.1} parent=11 // pred_check
          %p218 = pneg %p126
        $region26: #{tpu_custom_call.1} parent=11 // pred_check_branch
          %220 = sbr.rel (%p218) target = $region28
        $region27: #{tpu_custom_call.1} parent=11 // pred_region
          _
        $region28: #{tpu_custom_call.1} parent=11 // pred_fallthru
          _
        // Predicated region
        $region29: #{tpu_custom_call.1} parent=11 // pred_check
          %p221 = pneg %p147
        $region30: #{tpu_custom_call.1} parent=11 // pred_check_branch
          %223 = sbr.rel (%p221) target = $region32
        $region31: #{tpu_custom_call.1} parent=11 // pred_region
          _
        $region32: #{tpu_custom_call.1} parent=11 // pred_fallthru
          _
        // Predicated region
        $region33: #{tpu_custom_call.1} parent=11 // pred_check
          %p224 = pneg %p168
        $region34: #{tpu_custom_call.1} parent=11 // pred_check_branch
          %226 = sbr.rel (%p224) target = $region36
        $region35: #{tpu_custom_call.1} parent=11 // pred_region
          _
        $region36: #{tpu_custom_call.1} parent=11 // pred_fallthru
          _
      $region12: #{tpu_custom_call.1} parent=5 // pred_fallthru
        _
      %p227 = scmp.lt.s32.totalorder %s16, 2
      // Predicated region
      $region37: #{tpu_custom_call.1} parent=5 // pred_check
        %p228 = pneg %p227
      $region38: #{tpu_custom_call.1} parent=5 // pred_check_branch
        %230 = sbr.rel (%p228) target = $region40
      $region39: #{tpu_custom_call.1} parent=5 // pred_region
        // Predicated region
        $region41: #{tpu_custom_call.1} parent=39 // pred_check
          %p231 = pneg %p36
        $region42: #{tpu_custom_call.1} parent=39 // pred_check_branch
          %233 = sbr.rel (%p231) target = $region44
        $region43: #{tpu_custom_call.1} parent=39 // pred_region
          %s234 = sand.u32 %s26, 1
          %s235 = sand.u32 %s26, 1
          %s236 = smul.addr %s235, 16
          %s237 = scalar_lea.vmem [#allocation2], %s236
          %s238 = smul.addr %s16, 8
          %s239 = scalar_lea.vmem %s0, %s238
          // Predicated region
          $region45: #{tpu_custom_call.1} parent=43 // pred_check
            _
          $region46: #{tpu_custom_call.1} parent=43 // pred_check_branch
            %241 = sbr.rel (0) target = $region48
          $region47: #{tpu_custom_call.1} parent=43 // pred_region
            // Predicated region
            $region49: #{tpu_custom_call.1} parent=47 // pred_check
              _
            $region50: #{tpu_custom_call.1} parent=47 // pred_check_branch
              %243 = sbr.rel (0) target = $region52
            $region51: #{tpu_custom_call.1} parent=47 // pred_region
              // Predicated region
              $region64: #{tpu_custom_call.1} parent=51 // pred_check
                _
              $region65: #{tpu_custom_call.1} parent=51 // pred_check_branch
                %261 = sbr.rel (0) target = $region67
              $region66: #{tpu_custom_call.1} parent=51 // pred_region
                loop: start=0, step=1, limit=1
                $region68: #{tpu_custom_call.1} parent=66 // loop_pre_header
                  _
                $region69: #{tpu_custom_call.1} parent=66 // loop_header
                  %s263 = sphi 0, %s267
                  %p264 = scmp.ge.s32.totalorder %s263, 1
                  %s268 = sphi %s239, %s239
                  %s269 = sphi %s237, %s237
                $region70: #{tpu_custom_call.1} parent=66 // loop_header_branch
                  %266 = sbr.rel (%p264) target = $region74
                $region71: #{tpu_custom_call.1} parent=66 // loop_body
                  %v270 = vld [vmem:[%s268] sm:$0xff]
                  %271 = vst [vmem:[%s269] sm:$0xff] %v270
                  %v272 = vld [vmem:[%s268 + $0x10] sm:$0xff]
                  %273 = vst [vmem:[%s269 + $0x8] sm:$0xff] %v272
                $region72: #{tpu_custom_call.1} parent=66 // loop_footer
                  %s267 = sadd.s32 1, %s263
                $region73: #{tpu_custom_call.1} parent=66 // loop_footer_branch
                  %262 = sbr.rel target = $region69
                $region74: #{tpu_custom_call.1} parent=66 // loop_exit
                  _
              $region67: #{tpu_custom_call.1} parent=51 // pred_fallthru
                _
              // Predicated region
              $region75: #{tpu_custom_call.1} parent=51 // pred_check
                _
              $region76: #{tpu_custom_call.1} parent=51 // pred_check_branch
                %275 = sbr.rel target = $region78
              $region77: #{tpu_custom_call.1} parent=51 // pred_region
                _
              $region78: #{tpu_custom_call.1} parent=51 // pred_fallthru
                _
            $region52: #{tpu_custom_call.1} parent=47 // pred_fallthru
              _
            // Predicated region
            $region53: #{tpu_custom_call.1} parent=47 // pred_check
              _
            $region54: #{tpu_custom_call.1} parent=47 // pred_check_branch
              %245 = sbr.rel target = $region56
            $region55: #{tpu_custom_call.1} parent=47 // pred_region
              %s247 = ssub.s32 256, 1
              loop: start=0, step=1, limit=1
              $region57: #{tpu_custom_call.1} parent=55 // loop_pre_header
                _
              $region58: #{tpu_custom_call.1} parent=55 // loop_header
                %s249 = sphi 0, %s253
                %p250 = scmp.ge.s32.totalorder %s249, 1
                %s254 = sphi %s239, %s239
                %s255 = sphi %s237, %s237
              $region59: #{tpu_custom_call.1} parent=55 // loop_header_branch
                %252 = sbr.rel (%p250) target = $region63
              $region60: #{tpu_custom_call.1} parent=55 // loop_body
                %v256 = vld [vmem:[%s254] sm:%s247]
                %257 = vst [vmem:[%s255] sm:%s247] %v256
                %v258 = vld [vmem:[%s254 + $0x10] sm:%s247]
                %259 = vst [vmem:[%s255 + $0x8] sm:%s247] %v258
              $region61: #{tpu_custom_call.1} parent=55 // loop_footer
                %s253 = sadd.s32 1, %s249
              $region62: #{tpu_custom_call.1} parent=55 // loop_footer_branch
                %248 = sbr.rel target = $region58
              $region63: #{tpu_custom_call.1} parent=55 // loop_exit
                _
            $region56: #{tpu_custom_call.1} parent=47 // pred_fallthru
              _
          $region48: #{tpu_custom_call.1} parent=43 // pred_fallthru
            _
          %276 = vnop
        $region44: #{tpu_custom_call.1} parent=39 // pred_fallthru
          _
      $region40: #{tpu_custom_call.1} parent=5 // pred_fallthru
        _
      %p277 = scmp.le.s32.totalorder 1, %s16
      %p278 = scmp.lt.s32.totalorder %s16, 3
      %p279 = pnand %p277, %p278
      %p280 = pneg %p279
      // Predicated region
      $region79: #{tpu_custom_call.1} parent=5 // pred_check
        _
      $region80: #{tpu_custom_call.1} parent=5 // pred_check_branch
        %282 = sbr.rel (%p279) target = $region82
      $region81: #{tpu_custom_call.1} parent=5 // pred_region
        %s283 = ssub.s32 %s16, 1
        %s284 = sand.u32 %s29, 1
        %s285 = sand.u32 %s29, 1
        %s286 = smul.addr %s285, 16
        %s287 = scalar_lea.vmem [#allocation2], %s286
        // Predicated region
        $region83: #{tpu_custom_call.1} parent=81 // pred_check
          %p288 = pneg %p42
        $region84: #{tpu_custom_call.1} parent=81 // pred_check_branch
          %290 = sbr.rel (%p288) target = $region86
        $region85: #{tpu_custom_call.1} parent=81 // pred_region
          _
        $region86: #{tpu_custom_call.1} parent=81 // pred_fallthru
          _
        %s291 = sand.u32 %s29, 1
        %s292 = sand.u32 %s29, 1
        %s293 = smul.addr %s292, 16
        %s294 = scalar_lea.vmem [#allocation2], %s293
        %p295 = pneg %p42
        %p296 = pneg %p39
        %p297 = pneg %p63
        %p298 = pneg %p60
        %p299 = pneg %p84
        %p300 = pneg %p81
        %p301 = pneg %p105
        %p302 = pneg %p102
        %p303 = pneg %p126
        %p304 = pneg %p123
        %p305 = pneg %p147
        %p306 = pneg %p144
        %p307 = pneg %p168
        %p308 = pneg %p165
        %p309 = pneg %p194
        %p310 = pneg %p191
        %s311 = sand.u32 %s181, 1
        %s312 = scalar_lea.sflag [#allocation4], %s311
        %s313 = sand.u32 %s181, 1
        %s314 = smul.addr %s313, 8
        %s315 = scalar_lea.vmem [#allocation3], %s314
        %v316 = vld [vmem:[%s287] sm:$0xff]
        %v317 = vld [vmem:[%s287 + $0x8] sm:$0xff]
        %v318 = vld [vmem:[%s1] sm:$0xff]
        %v319 = vld [vmem:[%s1 + $0x8] sm:$0xff]
        %v320 = vld [vmem:[%s1 + $0x10] sm:$0xff]
        %v321 = vld [vmem:[%s1 + $0x18] sm:$0xff]
        %v322 = vand.u32 2147483647, %v318
        %v323 = vand.u32 2147483647, %v319
        %v324 = vand.u32 2147483647, %v320
        %v325 = vand.u32 2147483647, %v321
        %v326 = vld [vmem:[%s2] sm:$0xff]
        %v327 = vld [vmem:[%s2 + $0x8] sm:$0xff]
        %v328 = vld [vmem:[%s2 + $0x10] sm:$0xff]
        %v329 = vld [vmem:[%s2 + $0x18] sm:$0xff]
        %331 = vset.pattern.permute.xlu0 0
        %332 = vperm.xlu0 %331, %v326
        %v333 = vpop.permute.xlu0 %332
        %336 = vset.pattern.permute.xlu0 0
        %337 = vperm.xlu0 %336, %v327
        %v338 = vpop.permute.xlu0 %337
        %341 = vset.pattern.permute.xlu0 0
        %342 = vperm.xlu0 %341, %v328
        %v343 = vpop.permute.xlu0 %342
        %346 = vset.pattern.permute.xlu0 0
        %347 = vperm.xlu0 %346, %v329
        %v348 = vpop.permute.xlu0 %347
        %vm350 = vcmask 130048
        %v352 = vsel %vm350, %v322, 0
        %v355 = vsel %vm350, %v323, 0
        %v358 = vsel %vm350, %v324, 0
        %v361 = vsel %vm350, %v325, 0
        %363 = vmatpush.msra.mxu0 0.0
        %364 = vmatpush.msra.mxu0 0.0
        %365 = vmatpush.msra.mxu0 0.0
        %366 = vmatpush.msra.mxu0 0.0
        %367 = vmatpush.msra.mxu0 0.0
        %368 = vmatpush.msra.mxu0 0.0
        %369 = vmatpush.msra.mxu0 0.0
        %370 = vmatpush.msra.mxu0 0.0
        %371 = vmatpush.msra.mxu0 0.0
        %372 = vmatpush.msra.mxu0 0.0
        %373 = vmatpush.msra.mxu0 0.0
        %374 = vmatpush.msra.mxu0 0.0
        %375 = vmatpush.msra.mxu0 0.0
        %376 = vmatpush.msra.mxu0 0.0
        %377 = vmatpush.msra.mxu0 %v317
        %378 = vmatpush.msra.mxu0 %v316
        %379 = vmatmul.f32.gmra.mxu0 %v352
        %v380 = vpop.f32.mrf.mxu0
        %v381 = vadd.f32 %v333, %v380
        %382 = vmatmul.f32.gmra.mxu0 %v355
        %v383 = vpop.f32.mrf.mxu0
        %v384 = vadd.f32 %v338, %v383
        %385 = vmatmul.f32.gmra.mxu0 %v358
        %v386 = vpop.f32.mrf.mxu0
        %v387 = vadd.f32 %v343, %v386
        %388 = vmatmul.f32.gmra.mxu0 %v361
        %v389 = vpop.f32.mrf.mxu0
        %v390 = vadd.f32 %v348, %v389
        %391 = vdwg.mxu0
        %v392 = vmax.f32 %v381, 0.0
        %v393 = vmax.f32 %v384, 0.0
        %v394 = vmax.f32 %v387, 0.0
        %v395 = vmax.f32 %v390, 0.0
        %v396 = vld [vmem:[%s3] sm:$0xff]
        %v397 = vld [vmem:[%s3 + $0x8] sm:$0xff]
        %v398 = vld [vmem:[%s3 + $0x10] sm:$0xff]
        %v399 = vld [vmem:[%s3 + $0x18] sm:$0xff]
        %v400 = vand.u32 2147483647, %v396
        %v401 = vand.u32 2147483647, %v397
        %v402 = vand.u32 2147483647, %v398
        %v403 = vand.u32 2147483647, %v399
        %v404 = vld [vmem:[%s4] sm:$0xff]
        %v405 = vld [vmem:[%s4 + $0x8] sm:$0xff]
        %v406 = vld [vmem:[%s4 + $0x10] sm:$0xff]
        %v407 = vld [vmem:[%s4 + $0x18] sm:$0xff]
        %409 = vset.pattern.permute.xlu0 0
        %410 = vperm.xlu0 %409, %v404
        %v411 = vpop.permute.xlu0 %410
        %414 = vset.pattern.permute.xlu0 0
        %415 = vperm.xlu0 %414, %v405
        %v416 = vpop.permute.xlu0 %415
        %419 = vset.pattern.permute.xlu0 0
        %420 = vperm.xlu0 %419, %v406
        %v421 = vpop.permute.xlu0 %420
        %424 = vset.pattern.permute.xlu0 0
        %425 = vperm.xlu0 %424, %v407
        %v426 = vpop.permute.xlu0 %425
        %vm428 = vcmask 261120
        %v430 = vsel %vm428, %v400, 0
        %v433 = vsel %vm428, %v401, 0
        %v436 = vsel %vm428, %v402, 0
        %v439 = vsel %vm428, %v403, 0
        %441 = vmatpush.msra.mxu0 0.0
        %442 = vmatpush.msra.mxu0 0.0
        %443 = vmatpush.msra.mxu0 0.0
        %444 = vmatpush.msra.mxu0 0.0
        %445 = vmatpush.msra.mxu0 0.0
        %446 = vmatpush.msra.mxu0 0.0
        %447 = vmatpush.msra.mxu0 0.0
        %448 = vmatpush.msra.mxu0 0.0
        %449 = vmatpush.msra.mxu0 0.0
        %450 = vmatpush.msra.mxu0 0.0
        %451 = vmatpush.msra.mxu0 0.0
        %452 = vmatpush.msra.mxu0 0.0
        %453 = vmatpush.msra.mxu0 %v395
        %454 = vmatpush.msra.mxu0 %v394
        %455 = vmatpush.msra.mxu0 %v393
        %456 = vmatpush.msra.mxu0 %v392
        %457 = vmatmul.f32.gmra.mxu0 %v430
        %v458 = vpop.f32.mrf.mxu0
        %v459 = vadd.f32 %v411, %v458
        %460 = vmatmul.f32.gmra.mxu0 %v433
        %v461 = vpop.f32.mrf.mxu0
        %v462 = vadd.f32 %v416, %v461
        %463 = vmatmul.f32.gmra.mxu0 %v436
        %v464 = vpop.f32.mrf.mxu0
        %v465 = vadd.f32 %v421, %v464
        %466 = vmatmul.f32.gmra.mxu0 %v439
        %v467 = vpop.f32.mrf.mxu0
        %v468 = vadd.f32 %v426, %v467
        %469 = vdwg.mxu0
        %v470 = vmax.f32 %v459, 0.0
        %v471 = vmax.f32 %v462, 0.0
        %v472 = vmax.f32 %v465, 0.0
        %v473 = vmax.f32 %v468, 0.0
        %v474 = vld [vmem:[%s5] sm:$0xff]
        %v475 = vand.u32 2147483647, %v474
        %v476 = vld [vmem:[%s6] sm:$0xff]
        %478 = vset.pattern.permute.xlu0 0
        %479 = vperm.xlu0 %478, %v476
        %v480 = vpop.permute.xlu0 %479
        %v483 = vsel %vm428, %v475, 0
        %485 = vmatpush.msra.mxu0 0.0
        %486 = vmatpush.msra.mxu0 0.0
        %487 = vmatpush.msra.mxu0 0.0
        %488 = vmatpush.msra.mxu0 0.0
        %489 = vmatpush.msra.mxu0 0.0
        %490 = vmatpush.msra.mxu0 0.0
        %491 = vmatpush.msra.mxu0 0.0
        %492 = vmatpush.msra.mxu0 0.0
        %493 = vmatpush.msra.mxu0 0.0
        %494 = vmatpush.msra.mxu0 0.0
        %495 = vmatpush.msra.mxu0 0.0
        %496 = vmatpush.msra.mxu0 0.0
        %497 = vmatpush.msra.mxu0 %v473
        %498 = vmatpush.msra.mxu0 %v472
        %499 = vmatpush.msra.mxu0 %v471
        %500 = vmatpush.msra.mxu0 %v470
        %501 = vmatmul.f32.gmra.mxu0 %v483
        %v502 = vpop.f32.mrf.mxu0
        %v503 = vadd.f32 %v480, %v502
        %504 = vdwg.mxu0
        %505 = vst [vmem:[%s315] sm:$0xff] %v503
        %s506 = sand.u32 %s181, 1
        %s507 = scalar_lea.sflag [#allocation4], %s506
        %s508 = sand.u32 %s181, 1
        %s509 = smul.addr %s508, 8
        %s510 = scalar_lea.vmem [#allocation3], %s509
        // Predicated region
        $region87: #{tpu_custom_call.1} parent=81 // pred_check
          %p511 = pneg %p191
        $region88: #{tpu_custom_call.1} parent=81 // pred_check_branch
          %513 = sbr.rel (%p511) target = $region90
        $region89: #{tpu_custom_call.1} parent=81 // pred_region
          %515 = vsyncadd %s507, 0
          %s516 = smul.addr %s21, 8
          %s517 = scalar_lea.hbm %s7, %s516
          %s519 = sshll.u32 %s510, 4
          %s520 = int_to_ptr.vmem [resolvable:$true] %s519
          %s521 = sshll.u32 %s517, 4
          %s522 = int_to_ptr.hbm [resolvable:$true] %s521
          %524 = dma.vmem_to_hbm [thread:$0]  %s520, 128, %s522, %s507
        $region90: #{tpu_custom_call.1} parent=81 // pred_fallthru
          _
      $region82: #{tpu_custom_call.1} parent=5 // pred_fallthru
        _
      %p525 = scmp.le.s32.totalorder 2, %s16
      // Predicated region
      $region91: #{tpu_custom_call.1} parent=5 // pred_check
        %p526 = pneg %p525
      $region92: #{tpu_custom_call.1} parent=5 // pred_check_branch
        %528 = sbr.rel (%p526) target = $region94
      $region93: #{tpu_custom_call.1} parent=5 // pred_region
        %s529 = ssub.s32 %s16, 2
        // Predicated region
        $region95: #{tpu_custom_call.1} parent=93 // pred_check
          %p530 = pneg %p197
        $region96: #{tpu_custom_call.1} parent=93 // pred_check_branch
          %532 = sbr.rel (%p530) target = $region98
        $region97: #{tpu_custom_call.1} parent=93 // pred_region
          %s533 = sand.u32 %s182, 1
          %s534 = scalar_lea.sflag [#allocation4], %s533
          %s535 = sand.u32 %s182, 1
          %s536 = smul.addr %s535, 8
          %s537 = scalar_lea.vmem [#allocation3], %s536
          %539 = dma.done %s534, 128
        $region98: #{tpu_custom_call.1} parent=93 // pred_fallthru
          _
      $region94: #{tpu_custom_call.1} parent=5 // pred_fallthru
        _
    $region6: #{tpu_custom_call.1} parent=1 // loop_footer
      %s20 = sadd.s32 1, %s16
    $region7: #{tpu_custom_call.1} parent=1 // loop_footer_branch
      %15 = sbr.rel target = $region3
    $region8: #{tpu_custom_call.1} parent=1 // loop_exit
      _
    %540 = vsyncpa [#allocation4], 1
    %s541 = scalar_lea.sflag [#allocation4], 1
    %542 = vsyncpa %s541, 1

</llo_original>
